<compile_context>
chip_gen: v7x
topology: tpu7x:2x2x1
jax: 0.10.0
libtpu: 0.0.40
codegen_flags: <defaults>
</compile_context>

<pallas_src>
import math
from functools import partial

import jax
import jax.numpy as jnp
from jax.experimental import pallas as pl
from jax.experimental.pallas import tpu as pltpu

BN_EPS = 1e-5
LEAKY_SLOPE = 0.05


def _leaky_relu(x, slope=LEAKY_SLOPE):
    return jnp.where(x >= 0, x, slope * x)


def _bn_train_fused(h, gamma, beta, eps=BN_EPS):
    """Training-mode BatchNorm1d as one fused scale/shift over the batch axis.

    h: [B, F] f32; gamma/beta broadcastable to [F].  Biased variance via
    E[h^2] - mu^2 (single reduction sweep), clamped at 0 against catastrophic
    cancellation.  rsqrt goes to the EUP slot.
    """
    gamma = jnp.reshape(gamma, (1, -1))
    beta = jnp.reshape(beta, (1, -1))
    mu = jnp.mean(h, axis=0, keepdims=True)
    var = jnp.maximum(jnp.mean(h * h, axis=0, keepdims=True) - mu * mu, 0.0)
    scale = gamma * jax.lax.rsqrt(var + eps)
    shift = beta - mu * scale
    return h * scale + shift


def _make_multi_mlp_kernel(n_layer, matmul_dtype):
    """One grid step == one group of G MLPs packed block-diagonally."""
    has_hidden = n_layer > 1

    def kernel(*refs):
        if has_hidden:
            (x_ref, w0_ref, wh_ref, wl_ref,
             gamma_ref, beta_ref, gamma_o_ref, beta_o_ref, out_ref) = refs
        else:
            (x_ref, w0_ref, wl_ref,
             gamma_ref, beta_ref, gamma_o_ref, beta_o_ref, out_ref) = refs
            wh_ref = None

        # Linear biases intentionally omitted: they cancel exactly in the
        # immediately-following training-mode BatchNorm.

        gammas = gamma_ref[0]          # [n_layer, G*n_hid] f32
        betas = beta_ref[0]

        # layer 0: Linear -> BN(train) -> LeakyReLU(0.05)   (one MXU pass)
        h = jnp.dot(x_ref[0], w0_ref[0], preferred_element_type=jnp.float32)
        h = _leaky_relu(_bn_train_fused(h, gammas[0], betas[0]))

        # hidden layers 1 .. n_layer-1
        for l in range(n_layer - 1):
            h = jnp.dot(h.astype(matmul_dtype), wh_ref[0, l],
                        preferred_element_type=jnp.float32)
            h = _leaky_relu(_bn_train_fused(h, gammas[l + 1], betas[l + 1]))

        # output layer: Linear -> BN(train)   (no activation).
        # wl is block-diagonal, so this matmul emits the group's outputs
        # already in concat layout -> single lane-dense store.
        h = jnp.dot(h.astype(matmul_dtype), wl_ref[0],
                    preferred_element_type=jnp.float32)
        h = _bn_train_fused(h, gamma_o_ref[0], beta_o_ref[0])

        out_ref[...] = h.astype(out_ref.dtype)

    return kernel


# ---------------- host-side block-diagonal packing ----------------

def _block_diag_groups(w, num_groups):
    """[M, a, b] -> [num_groups, G*a, G*b] (block-diagonal within each group)."""
    M, a, b = w.shape
    G = M // num_groups
    wg = w.reshape(num_groups, G, a, b)
    eye = jnp.eye(G, dtype=w.dtype)
    return jnp.einsum('ngab,gh->ngahb', wg, eye).reshape(num_groups, G * a, G * b)


def _block_diag_layers_groups(w, num_groups):
    """[M, L, a, b] -> [num_groups, L, G*a, G*b]."""
    M, L, a, b = w.shape
    G = M // num_groups
    wg = w.reshape(num_groups, G, L, a, b)
    eye = jnp.eye(G, dtype=w.dtype)
    return jnp.einsum('nglab,gh->nlgahb', wg, eye).reshape(
        num_groups, L, G * a, G * b)


def _pack_features_groups(p, num_groups):
    """[M, L, f] -> [num_groups, L, G*f] in concat feature order."""
    M, L, f = p.shape
    G = M // num_groups
    return (p.reshape(num_groups, G, L, f)
             .transpose(0, 2, 1, 3)
             .reshape(num_groups, L, G * f))


def multi_mlp_forward(x, params, *, n_layer, mlps_per_step=None,
                      matmul_dtype=jnp.bfloat16):
    """x: [mlp_num, batch, in_dim] -> [batch, mlp_num * out_dim] (training branch)."""
    mlp_num, batch, in_dim = x.shape
    n_hid = params["w0"].shape[-1]
    out_dim = params["wl"].shape[-1]
    has_hidden = n_layer > 1

    # Group G MLPs per grid step; default: all in one step (per-MLP work is tiny).
    G = mlp_num if mlps_per_step is None else mlps_per_step
    assert mlp_num % G == 0, "mlps_per_step must divide mlp_num"
    num_groups = mlp_num // G
    # Output block lane extent must be 128-aligned unless it spans the whole array.
    assert num_groups == 1 or (G * out_dim) % 128 == 0, \
        "pick mlps_per_step so G*out_dim is a multiple of 128, or group all MLPs"

    Fi, Fh, Fo = G * in_dim, G * n_hid, G * out_dim

    # ---- pack inputs/weights block-diagonally (concat layout falls out of MXU) ----
    x_p = (x.reshape(num_groups, G, batch, in_dim)
             .transpose(0, 2, 1, 3)
             .reshape(num_groups, batch, Fi)
             .astype(matmul_dtype))
    w0_p = _block_diag_groups(params["w0"], num_groups).astype(matmul_dtype)
    wl_p = _block_diag_groups(params["wl"], num_groups).astype(matmul_dtype)
    gamma_p = _pack_features_groups(params["gamma"], num_groups)
    beta_p = _pack_features_groups(params["beta"], num_groups)
    gamma_o_p = _pack_features_groups(params["gamma_o"], num_groups)
    beta_o_p = _pack_features_groups(params["beta_o"], num_groups)

    in_specs = [
        pl.BlockSpec((1, batch, Fi), lambda g: (g, 0, 0)),        # x packed
        pl.BlockSpec((1, Fi, Fh), lambda g: (g, 0, 0)),           # W0 block-diag
    ]
    inputs = [x_p, w0_p]
    if has_hidden:
        n_hl = params["wh"].shape[1]                              # n_layer - 1
        wh_p = _block_diag_layers_groups(params["wh"], num_groups).astype(matmul_dtype)
        in_specs.append(pl.BlockSpec((1, n_hl, Fh, Fh), lambda g: (g, 0, 0, 0)))
        inputs.append(wh_p)
    in_specs += [
        pl.BlockSpec((1, Fh, Fo), lambda g: (g, 0, 0)),           # WL block-diag
        pl.BlockSpec((1, n_layer, Fh), lambda g: (g, 0, 0)),      # gamma (hidden BNs)
        pl.BlockSpec((1, n_layer, Fh), lambda g: (g, 0, 0)),      # beta
        pl.BlockSpec((1, 1, Fo), lambda g: (g, 0, 0)),            # gamma_o
        pl.BlockSpec((1, 1, Fo), lambda g: (g, 0, 0)),            # beta_o
    ]
    inputs += [wl_p, gamma_p, beta_p, gamma_o_p, beta_o_p]

    # ---- VMEM budget from actual block sizes (inputs are double-buffered) ----
    in_block_bytes = sum(int(a.size) * a.dtype.itemsize for a in inputs) // num_groups
    out_block_bytes = batch * Fo * 4
    vmem_limit = int(min(64 * 2**20,
                         max(32 * 2**20,
                             2 * (in_block_bytes + out_block_bytes) + (4 << 20))))

    # ---- advisory cost estimate ----
    flops = int(num_groups * 2 * batch *
                (Fi * Fh + (n_layer - 1) * Fh * Fh + Fh * Fo))
    transcendentals = int(num_groups * (n_layer * Fh + Fo))       # rsqrt per BN feature
    bytes_accessed = int(sum(int(a.size) * a.dtype.itemsize for a in inputs)
                         + batch * mlp_num * out_dim * 4)

    kernel = _make_multi_mlp_kernel(n_layer, matmul_dtype)

    grid_spec = pltpu.PrefetchScalarGridSpec(
        num_scalar_prefetch=0,
        grid=(num_groups,),
        in_specs=in_specs,
        out_specs=pl.BlockSpec((batch, Fo), lambda g: (0, g)),
    )

    return pl.pallas_call(
        kernel,
        out_shape=jax.ShapeDtypeStruct((batch, mlp_num * out_dim), jnp.float32),
        grid_spec=grid_spec,
        compiler_params=pltpu.CompilerParams(
            # Groups are fully independent -> splits across v7x's 2 TCs only
            # when num_groups >= 2 (set mlps_per_step accordingly).
            dimension_semantics=("parallel",),
            vmem_limit_bytes=vmem_limit,
        ),
        cost_estimate=pl.CostEstimate(
            flops=flops, transcendentals=transcendentals,
            bytes_accessed=bytes_accessed),
    )(*inputs)


# ---------------- deterministic parameter construction ----------------

def init_params(key, mlp_num, in_dim, n_hid, out_dim, n_layer):
    def xavier(k, fan_in, fan_out):
        a = math.sqrt(6.0 / (fan_in + fan_out))
        return jax.random.uniform(k, (fan_in, fan_out), jnp.float32, -a, a)

    def lin_bias(k, fan_in, n):
        b = 1.0 / math.sqrt(fan_in)
        return jax.random.uniform(k, (n,), jnp.float32, -b, b)

    w0, b0, wh, bh, wl, bl = [], [], [], [], [], []
    for m in range(mlp_num):
        km = jax.random.fold_in(key, m)
        ks = jax.random.split(km, 2 * (n_layer + 1))
        w0.append(xavier(ks[0], in_dim, n_hid))
        b0.append(lin_bias(ks[1], in_dim, n_hid))
        wh_m, bh_m = [], []
        for l in range(n_layer - 1):
            wh_m.append(xavier(ks[2 + 2 * l], n_hid, n_hid))
            bh_m.append(lin_bias(ks[3 + 2 * l], n_hid, n_hid))
        if wh_m:
            wh.append(jnp.stack(wh_m))
            bh.append(jnp.stack(bh_m))
        wl.append(xavier(ks[-2], n_hid, out_dim))
        bl.append(lin_bias(ks[-1], n_hid, out_dim))

    params = {
        "w0": jnp.stack(w0),                                          # [M, in, hid]
        "b0": jnp.stack(b0),                                          # [M, hid]   (reference only)
        "wl": jnp.stack(wl),                                          # [M, hid, out]
        "bl": jnp.stack(bl),                                          # [M, out]   (reference only)
        "gamma": jnp.ones((mlp_num, n_layer, n_hid), jnp.float32),    # BN weight = 1
        "beta": jnp.zeros((mlp_num, n_layer, n_hid), jnp.float32),    # BN bias = 0
        "gamma_o": jnp.ones((mlp_num, 1, out_dim), jnp.float32),
        "beta_o": jnp.zeros((mlp_num, 1, out_dim), jnp.float32),
    }
    if wh:
        params["wh"] = jnp.stack(wh)                                  # [M, n_layer-1, hid, hid]
        params["bh"] = jnp.stack(bh)                                  # [M, n_layer-1, hid] (reference only)
    return params


# ---------------- pure-JAX reference (keeps the linear biases) ----------------

def _batchnorm_train_ref(h, gamma, beta, eps=BN_EPS):
    mu = jnp.mean(h, axis=0, keepdims=True)
    var = jnp.mean((h - mu) ** 2, axis=0, keepdims=True)
    return (h - mu) * jax.lax.rsqrt(var + eps) * gamma + beta


def reference_forward(x, params, *, n_layer):
    mlp_num = x.shape[0]
    outs = []
    for m in range(mlp_num):
        h = x[m]
        h = h @ params["w0"][m] + params["b0"][m]
        h = _batchnorm_train_ref(h, params["gamma"][m, 0], params["beta"][m, 0])
        h = _leaky_relu(h)
        for l in range(n_layer - 1):
            h = h @ params["wh"][m, l] + params["bh"][m, l]
            h = _batchnorm_train_ref(h, params["gamma"][m, l + 1], params["beta"][m, l + 1])
            h = _leaky_relu(h)
        h = h @ params["wl"][m] + params["bl"][m]
        h = _batchnorm_train_ref(h, params["gamma_o"][m, 0], params["beta_o"][m, 0])
        outs.append(h)
    return jnp.concatenate(outs, axis=1)


if __name__ == "__main__":
    key = jax.random.PRNGKey(0)

    # ---- Config A: hidden layers present (training branch: one input per MLP) ----
    mlp_num, n_layer = 3, 2
    in_dim, n_hid, out_dim = 16, 32, 8
    batch = 8
    kx, kp = jax.random.split(key)
    x = jax.random.normal(kx, (mlp_num, batch, in_dim), jnp.float32)
    params = init_params(kp, mlp_num, in_dim, n_hid, out_dim, n_layer)
    y_ref = reference_forward(x, params, n_layer=n_layer)

    # f32 MXU operands: tight check of the exact math path.
    fwd_f32 = jax.jit(partial(multi_mlp_forward, n_layer=n_layer,
                              matmul_dtype=jnp.float32))
    y32 = jax.block_until_ready(fwd_f32(x, params))
    assert y32.shape == (batch, mlp_num * out_dim), y32.shape
    err32 = float(jnp.max(jnp.abs(y32 - y_ref)))
    assert jnp.allclose(y32, y_ref, atol=1e-2, rtol=1e-2), err32

    # bf16 MXU operands (default, preferred on v6e/v7x): looser tolerance vs. the
    # f32 reference — the gap is pure operand rounding, amplified by small-batch BN.
    fwd_bf16 = jax.jit(partial(multi_mlp_forward, n_layer=n_layer))
    y = jax.block_until_ready(fwd_bf16(x, params))
    err = float(jnp.max(jnp.abs(y - y_ref)))
    assert jnp.allclose(y, y_ref, atol=1e-1, rtol=1e-1), err

    # ---- Config B: n_layer == 1 (no hidden weight stack) ----
    mlp_num2, n_layer2 = 2, 1
    kx2, kp2 = jax.random.split(jax.random.fold_in(key, 1))
    x2 = jax.random.normal(kx2, (mlp_num2, batch, in_dim), jnp.float32)
    params2 = init_params(kp2, mlp_num2, in_dim, n_hid, out_dim, n_layer2)
    y2 = jax.block_until_ready(
        jax.jit(partial(multi_mlp_forward, n_layer=n_layer2,
                        matmul_dtype=jnp.float32))(x2, params2))
    y2_ref = reference_forward(x2, params2, n_layer=n_layer2)
    err2 = float(jnp.max(jnp.abs(y2 - y2_ref)))
    assert jnp.allclose(y2, y2_ref, atol=1e-2, rtol=1e-2), err2

    print("KERNEL_OK")
</pallas_src>

<mosaic_0001>
module attributes {stable_mosaic.version = 11 : i64} {
  func.func @kernel(%arg0: i32, %arg1: memref<1x8x48xf32, #tpu.memory_space<vmem>>, %arg2: memref<1x48x96xf32, #tpu.memory_space<vmem>>, %arg3: memref<1x1x96x96xf32, #tpu.memory_space<vmem>>, %arg4: memref<1x96x24xf32, #tpu.memory_space<vmem>>, %arg5: memref<1x2x96xf32, #tpu.memory_space<vmem>>, %arg6: memref<1x2x96xf32, #tpu.memory_space<vmem>>, %arg7: memref<1x1x24xf32, #tpu.memory_space<vmem>>, %arg8: memref<1x1x24xf32, #tpu.memory_space<vmem>>, %arg9: memref<8x24xf32, #tpu.memory_space<vmem>>) attributes {dimension_semantics = [#tpu.dimension_semantics<parallel>], iteration_bounds = array<i64: 1>, scalar_prefetch = 0 : i64, scratch_operands = 0 : i64, tpu.core_type = #tpu.core_type<tc>, window_params = [{transform_indices = @transform_0, window_bounds = array<i64: 1, 8, 48>}, {transform_indices = @transform_1, window_bounds = array<i64: 1, 48, 96>}, {transform_indices = @transform_2, window_bounds = array<i64: 1, 1, 96, 96>}, {transform_indices = @transform_3, window_bounds = array<i64: 1, 96, 24>}, {transform_indices = @transform_4, window_bounds = array<i64: 1, 2, 96>}, {transform_indices = @transform_5, window_bounds = array<i64: 1, 2, 96>}, {transform_indices = @transform_6, window_bounds = array<i64: 1, 1, 24>}, {transform_indices = @transform_7, window_bounds = array<i64: 1, 1, 24>}, {transform_indices = @transform_8, window_bounds = array<i64: 8, 24>}]} {
    %c0 = arith.constant 0 : index
    %c0_0 = arith.constant 0 : index
    %c0_1 = arith.constant 0 : index
    %0 = vector.load %arg5[%c0, %c0_0, %c0_1] : memref<1x2x96xf32, #tpu.memory_space<vmem>>, vector<1x2x96xf32>
    %1 = vector.shape_cast %0 : vector<1x2x96xf32> to vector<2x96xf32>
    %c0_2 = arith.constant 0 : index
    %c0_3 = arith.constant 0 : index
    %c0_4 = arith.constant 0 : index
    %2 = vector.load %arg6[%c0_2, %c0_3, %c0_4] : memref<1x2x96xf32, #tpu.memory_space<vmem>>, vector<1x2x96xf32>
    %3 = vector.shape_cast %2 : vector<1x2x96xf32> to vector<2x96xf32>
    %c0_5 = arith.constant 0 : index
    %c0_6 = arith.constant 0 : index
    %c0_7 = arith.constant 0 : index
    %4 = vector.load %arg1[%c0_5, %c0_6, %c0_7] : memref<1x8x48xf32, #tpu.memory_space<vmem>>, vector<1x8x48xf32>
    %5 = vector.shape_cast %4 : vector<1x8x48xf32> to vector<8x48xf32>
    %c0_8 = arith.constant 0 : index
    %c0_9 = arith.constant 0 : index
    %c0_10 = arith.constant 0 : index
    %6 = vector.load %arg2[%c0_8, %c0_9, %c0_10] : memref<1x48x96xf32, #tpu.memory_space<vmem>>, vector<1x48x96xf32>
    %7 = vector.shape_cast %6 : vector<1x48x96xf32> to vector<48x96xf32>
    %cst = arith.constant dense<0.000000e+00> : vector<8x96xf32>
    %8 = tpu.matmul %5, %7, %cst {dimension_numbers = #tpu.dot_dimension_numbers<[1], [0], [0], [1], [0, 0, 1, 1], [], []>} : vector<8x48xf32>, vector<48x96xf32>, vector<8x96xf32> -> vector<8x96xf32>
    %9 = vector.extract_strided_slice %1 {offsets = [0, 0], sizes = [1, 96], strides = [1, 1]} : vector<2x96xf32> to vector<1x96xf32>
    %10 = vector.shape_cast %9 : vector<1x96xf32> to vector<96xf32>
    %11 = vector.extract_strided_slice %3 {offsets = [0, 0], sizes = [1, 96], strides = [1, 1]} : vector<2x96xf32> to vector<1x96xf32>
    %12 = vector.shape_cast %11 : vector<1x96xf32> to vector<96xf32>
    %13 = vector.shape_cast %10 : vector<96xf32> to vector<1x96xf32>
    %14 = vector.shape_cast %12 : vector<96xf32> to vector<1x96xf32>
    %cst_11 = arith.constant dense<0.000000e+00> : vector<96xf32>
    %15 = vector.multi_reduction <add>, %8, %cst_11 [0] : vector<8x96xf32> to vector<96xf32>
    %16 = vector.shape_cast %15 : vector<96xf32> to vector<1x96xf32>
    %cst_12 = arith.constant 8.000000e+00 : f32
    %17 = vector.broadcast %cst_12 : f32 to vector<1x96xf32>
    %18 = arith.divf %16, %17 : vector<1x96xf32>
    %19 = arith.mulf %8, %8 : vector<8x96xf32>
    %cst_13 = arith.constant dense<0.000000e+00> : vector<96xf32>
    %20 = vector.multi_reduction <add>, %19, %cst_13 [0] : vector<8x96xf32> to vector<96xf32>
    %21 = vector.shape_cast %20 : vector<96xf32> to vector<1x96xf32>
    %cst_14 = arith.constant 8.000000e+00 : f32
    %22 = vector.broadcast %cst_14 : f32 to vector<1x96xf32>
    %23 = arith.divf %21, %22 : vector<1x96xf32>
    %24 = arith.mulf %18, %18 : vector<1x96xf32>
    %25 = arith.subf %23, %24 : vector<1x96xf32>
    %cst_15 = arith.constant 0.000000e+00 : f32
    %26 = vector.broadcast %cst_15 : f32 to vector<1x96xf32>
    %27 = arith.maximumf %25, %26 : vector<1x96xf32>
    %cst_16 = arith.constant 9.99999974E-6 : f32
    %28 = vector.broadcast %cst_16 : f32 to vector<1x96xf32>
    %29 = arith.addf %27, %28 : vector<1x96xf32>
    %30 = math.rsqrt %29 : vector<1x96xf32>
    %31 = arith.mulf %13, %30 : vector<1x96xf32>
    %32 = arith.mulf %18, %31 : vector<1x96xf32>
    %33 = arith.subf %14, %32 : vector<1x96xf32>
    %34 = vector.broadcast %31 : vector<1x96xf32> to vector<8x96xf32>
    %35 = arith.mulf %8, %34 : vector<8x96xf32>
    %36 = vector.broadcast %33 : vector<1x96xf32> to vector<8x96xf32>
    %37 = arith.addf %35, %36 : vector<8x96xf32>
    %cst_17 = arith.constant 0.000000e+00 : f32
    %38 = vector.broadcast %cst_17 : f32 to vector<8x96xf32>
    %39 = arith.cmpf oge, %37, %38 : vector<8x96xf32>
    %cst_18 = arith.constant 5.000000e-02 : f32
    %40 = vector.broadcast %cst_18 : f32 to vector<8x96xf32>
    %41 = arith.mulf %40, %37 : vector<8x96xf32>
    %42 = arith.select %39, %37, %41 : vector<8x96xi1>, vector<8x96xf32>
    %c0_19 = arith.constant 0 : index
    %c0_20 = arith.constant 0 : index
    %c0_21 = arith.constant 0 : index
    %c0_22 = arith.constant 0 : index
    %43 = vector.load %arg3[%c0_19, %c0_20, %c0_21, %c0_22] : memref<1x1x96x96xf32, #tpu.memory_space<vmem>>, vector<1x1x96x96xf32>
    %44 = vector.shape_cast %43 : vector<1x1x96x96xf32> to vector<96x96xf32>
    %cst_23 = arith.constant dense<0.000000e+00> : vector<8x96xf32>
    %45 = tpu.matmul %42, %44, %cst_23 {dimension_numbers = #tpu.dot_dimension_numbers<[1], [0], [0], [1], [0, 0, 1, 1], [], []>} : vector<8x96xf32>, vector<96x96xf32>, vector<8x96xf32> -> vector<8x96xf32>
    %46 = vector.extract_strided_slice %1 {offsets = [1, 0], sizes = [1, 96], strides = [1, 1]} : vector<2x96xf32> to vector<1x96xf32>
    %47 = vector.shape_cast %46 : vector<1x96xf32> to vector<96xf32>
    %48 = vector.extract_strided_slice %3 {offsets = [1, 0], sizes = [1, 96], strides = [1, 1]} : vector<2x96xf32> to vector<1x96xf32>
    %49 = vector.shape_cast %48 : vector<1x96xf32> to vector<96xf32>
    %50 = vector.shape_cast %47 : vector<96xf32> to vector<1x96xf32>
    %51 = vector.shape_cast %49 : vector<96xf32> to vector<1x96xf32>
    %cst_24 = arith.constant dense<0.000000e+00> : vector<96xf32>
    %52 = vector.multi_reduction <add>, %45, %cst_24 [0] : vector<8x96xf32> to vector<96xf32>
    %53 = vector.shape_cast %52 : vector<96xf32> to vector<1x96xf32>
    %cst_25 = arith.constant 8.000000e+00 : f32
    %54 = vector.broadcast %cst_25 : f32 to vector<1x96xf32>
    %55 = arith.divf %53, %54 : vector<1x96xf32>
    %56 = arith.mulf %45, %45 : vector<8x96xf32>
    %cst_26 = arith.constant dense<0.000000e+00> : vector<96xf32>
    %57 = vector.multi_reduction <add>, %56, %cst_26 [0] : vector<8x96xf32> to vector<96xf32>
    %58 = vector.shape_cast %57 : vector<96xf32> to vector<1x96xf32>
    %cst_27 = arith.constant 8.000000e+00 : f32
    %59 = vector.broadcast %cst_27 : f32 to vector<1x96xf32>
    %60 = arith.divf %58, %59 : vector<1x96xf32>
    %61 = arith.mulf %55, %55 : vector<1x96xf32>
    %62 = arith.subf %60, %61 : vector<1x96xf32>
    %cst_28 = arith.constant 0.000000e+00 : f32
    %63 = vector.broadcast %cst_28 : f32 to vector<1x96xf32>
    %64 = arith.maximumf %62, %63 : vector<1x96xf32>
    %cst_29 = arith.constant 9.99999974E-6 : f32
    %65 = vector.broadcast %cst_29 : f32 to vector<1x96xf32>
    %66 = arith.addf %64, %65 : vector<1x96xf32>
    %67 = math.rsqrt %66 : vector<1x96xf32>
    %68 = arith.mulf %50, %67 : vector<1x96xf32>
    %69 = arith.mulf %55, %68 : vector<1x96xf32>
    %70 = arith.subf %51, %69 : vector<1x96xf32>
    %71 = vector.broadcast %68 : vector<1x96xf32> to vector<8x96xf32>
    %72 = arith.mulf %45, %71 : vector<8x96xf32>
    %73 = vector.broadcast %70 : vector<1x96xf32> to vector<8x96xf32>
    %74 = arith.addf %72, %73 : vector<8x96xf32>
    %cst_30 = arith.constant 0.000000e+00 : f32
    %75 = vector.broadcast %cst_30 : f32 to vector<8x96xf32>
    %76 = arith.cmpf oge, %74, %75 : vector<8x96xf32>
    %cst_31 = arith.constant 5.000000e-02 : f32
    %77 = vector.broadcast %cst_31 : f32 to vector<8x96xf32>
    %78 = arith.mulf %77, %74 : vector<8x96xf32>
    %79 = arith.select %76, %74, %78 : vector<8x96xi1>, vector<8x96xf32>
    %c0_32 = arith.constant 0 : index
    %c0_33 = arith.constant 0 : index
    %c0_34 = arith.constant 0 : index
    %80 = vector.load %arg4[%c0_32, %c0_33, %c0_34] : memref<1x96x24xf32, #tpu.memory_space<vmem>>, vector<1x96x24xf32>
    %81 = vector.shape_cast %80 : vector<1x96x24xf32> to vector<96x24xf32>
    %cst_35 = arith.constant dense<0.000000e+00> : vector<8x24xf32>
    %82 = tpu.matmul %79, %81, %cst_35 {dimension_numbers = #tpu.dot_dimension_numbers<[1], [0], [0], [1], [0, 0, 1, 1], [], []>} : vector<8x96xf32>, vector<96x24xf32>, vector<8x24xf32> -> vector<8x24xf32>
    %c0_36 = arith.constant 0 : index
    %c0_37 = arith.constant 0 : index
    %c0_38 = arith.constant 0 : index
    %83 = vector.load %arg7[%c0_36, %c0_37, %c0_38] : memref<1x1x24xf32, #tpu.memory_space<vmem>>, vector<1x1x24xf32>
    %84 = vector.shape_cast %83 : vector<1x1x24xf32> to vector<1x24xf32>
    %c0_39 = arith.constant 0 : index
    %c0_40 = arith.constant 0 : index
    %c0_41 = arith.constant 0 : index
    %85 = vector.load %arg8[%c0_39, %c0_40, %c0_41] : memref<1x1x24xf32, #tpu.memory_space<vmem>>, vector<1x1x24xf32>
    %86 = vector.shape_cast %85 : vector<1x1x24xf32> to vector<1x24xf32>
    %cst_42 = arith.constant dense<0.000000e+00> : vector<24xf32>
    %87 = vector.multi_reduction <add>, %82, %cst_42 [0] : vector<8x24xf32> to vector<24xf32>
    %88 = vector.shape_cast %87 : vector<24xf32> to vector<1x24xf32>
    %cst_43 = arith.constant 8.000000e+00 : f32
    %89 = vector.broadcast %cst_43 : f32 to vector<1x24xf32>
    %90 = arith.divf %88, %89 : vector<1x24xf32>
    %91 = arith.mulf %82, %82 : vector<8x24xf32>
    %cst_44 = arith.constant dense<0.000000e+00> : vector<24xf32>
    %92 = vector.multi_reduction <add>, %91, %cst_44 [0] : vector<8x24xf32> to vector<24xf32>
    %93 = vector.shape_cast %92 : vector<24xf32> to vector<1x24xf32>
    %cst_45 = arith.constant 8.000000e+00 : f32
    %94 = vector.broadcast %cst_45 : f32 to vector<1x24xf32>
    %95 = arith.divf %93, %94 : vector<1x24xf32>
    %96 = arith.mulf %90, %90 : vector<1x24xf32>
    %97 = arith.subf %95, %96 : vector<1x24xf32>
    %cst_46 = arith.constant 0.000000e+00 : f32
    %98 = vector.broadcast %cst_46 : f32 to vector<1x24xf32>
    %99 = arith.maximumf %97, %98 : vector<1x24xf32>
    %cst_47 = arith.constant 9.99999974E-6 : f32
    %100 = vector.broadcast %cst_47 : f32 to vector<1x24xf32>
    %101 = arith.addf %99, %100 : vector<1x24xf32>
    %102 = math.rsqrt %101 : vector<1x24xf32>
    %103 = arith.mulf %84, %102 : vector<1x24xf32>
    %104 = arith.mulf %90, %103 : vector<1x24xf32>
    %105 = arith.subf %86, %104 : vector<1x24xf32>
    %106 = vector.broadcast %103 : vector<1x24xf32> to vector<8x24xf32>
    %107 = arith.mulf %82, %106 : vector<8x24xf32>
    %108 = vector.broadcast %105 : vector<1x24xf32> to vector<8x24xf32>
    %109 = arith.addf %107, %108 : vector<8x24xf32>
    %c0_48 = arith.constant 0 : index
    %c0_49 = arith.constant 0 : index
    %110 = vector.load %arg9[%c0_48, %c0_49] : memref<8x24xf32, #tpu.memory_space<vmem>>, vector<8x24xf32>
    tpu.vector_store %arg9[%c0_48, %c0_49], %109 {strides = array<i32>} : memref<8x24xf32, #tpu.memory_space<vmem>>, vector<8x24xf32>,
    return
  }
  func.func @transform_0(%arg0: i32) -> (i32, i32, i32) {
    %c0_i32 = arith.constant 0 : i32
    %c0_i32_0 = arith.constant 0 : i32
    %c0_i32_1 = arith.constant 0 : i32
    return %arg0, %c0_i32, %c0_i32_0 : i32, i32, i32
  }
  func.func @transform_1(%arg0: i32) -> (i32, i32, i32) {
    %c0_i32 = arith.constant 0 : i32
    %c0_i32_0 = arith.constant 0 : i32
    %c0_i32_1 = arith.constant 0 : i32
    return %arg0, %c0_i32, %c0_i32_0 : i32, i32, i32
  }
  func.func @transform_2(%arg0: i32) -> (i32, i32, i32, i32) {
    %c0_i32 = arith.constant 0 : i32
    %c0_i32_0 = arith.constant 0 : i32
    %c0_i32_1 = arith.constant 0 : i32
    %c0_i32_2 = arith.constant 0 : i32
    return %arg0, %c0_i32, %c0_i32_0, %c0_i32_1 : i32, i32, i32, i32
  }
  func.func @transform_3(%arg0: i32) -> (i32, i32, i32) {
    %c0_i32 = arith.constant 0 : i32
    %c0_i32_0 = arith.constant 0 : i32
    %c0_i32_1 = arith.constant 0 : i32
    return %arg0, %c0_i32, %c0_i32_0 : i32, i32, i32
  }
  func.func @transform_4(%arg0: i32) -> (i32, i32, i32) {
    %c0_i32 = arith.constant 0 : i32
    %c0_i32_0 = arith.constant 0 : i32
    %c0_i32_1 = arith.constant 0 : i32
    return %arg0, %c0_i32, %c0_i32_0 : i32, i32, i32
  }
  func.func @transform_5(%arg0: i32) -> (i32, i32, i32) {
    %c0_i32 = arith.constant 0 : i32
    %c0_i32_0 = arith.constant 0 : i32
    %c0_i32_1 = arith.constant 0 : i32
    return %arg0, %c0_i32, %c0_i32_0 : i32, i32, i32
  }
  func.func @transform_6(%arg0: i32) -> (i32, i32, i32) {
    %c0_i32 = arith.constant 0 : i32
    %c0_i32_0 = arith.constant 0 : i32
    %c0_i32_1 = arith.constant 0 : i32
    return %arg0, %c0_i32, %c0_i32_0 : i32, i32, i32
  }
  func.func @transform_7(%arg0: i32) -> (i32, i32, i32) {
    %c0_i32 = arith.constant 0 : i32
    %c0_i32_0 = arith.constant 0 : i32
    %c0_i32_1 = arith.constant 0 : i32
    return %arg0, %c0_i32, %c0_i32_0 : i32, i32, i32
  }
  func.func @transform_8(%arg0: i32) -> (i32, i32) {
    %c0_i32 = arith.constant 0 : i32
    %c0_i32_0 = arith.constant 0 : i32
    return %c0_i32, %arg0 : i32, i32
  }
}

</mosaic_0001>

<llo_original>
// kernel: multi_mlp_forward.1
$region0: #{multi_mlp_forward.1}
  #allocation0 [shape = 'u32[]', space=smem, size = 0x4, offset = 0x4, fixed_abs, tag = 'smem constant byte address 0x4 - core index']
  #allocation1 [shape = 'u32[144,128]{1,0:T(1,128)}', space=vmem, size = 0x12000, scoped, tag = 'internal scratch']
  %s0 = inlined_call_operand.vmem [shape: f32[1,8,48], index: 0, kind: input, shape index: {}]
  %s1 = inlined_call_operand.vmem [shape: f32[1,48,96], index: 1, kind: input, shape index: {}]
  %s2 = inlined_call_operand.vmem [shape: f32[1,1,96,96], index: 2, kind: input, shape index: {}]
  %s3 = inlined_call_operand.vmem [shape: f32[1,96,24], index: 3, kind: input, shape index: {}]
  %s4 = inlined_call_operand.vmem [shape: f32[1,2,96], index: 4, kind: input, shape index: {}]
  %s5 = inlined_call_operand.vmem [shape: f32[1,2,96], index: 5, kind: input, shape index: {}]
  %s6 = inlined_call_operand.vmem [shape: f32[1,1,24], index: 6, kind: input, shape index: {}]
  %s7 = inlined_call_operand.vmem [shape: f32[1,1,24], index: 7, kind: input, shape index: {}]
  %s8 = inlined_call_operand.hbm [shape: f32[8,24], index: 8, kind: output, shape index: {}]
  %s9 = sld [smem:[#allocation0]]
  $region42: #{multi_mlp_forward.1} parent=0
    _
  %s11 = ssub.s32 1, %s9
  %s12 = scalar_select 0, %s11, %s9
  $region1: #{multi_mlp_forward.1} parent=0
    #allocation2 [shape = 'u8[4096]{0}', space=vmem, size = 0x1000, scoped, tag = 'output window, operand 0, single buffered']
    #allocation3 [shape = 's32[1]{0}', space=sflag, size = 0x4, scoped, tag = 'scoped memory for multi_mlp_forward.1']
    %13 = vsyncpa [#allocation3], 0
    // Predicated region
    $region2: #{multi_mlp_forward.1} parent=1 // pred_check
      _
    $region3: #{multi_mlp_forward.1} parent=1 // pred_check_branch
      %15 = sbr.rel (0) target = $region5
    $region4: #{multi_mlp_forward.1} parent=1 // pred_region
      _
    $region5: #{multi_mlp_forward.1} parent=1 // pred_fallthru
      _
    // Predicated region
    $region6: #{multi_mlp_forward.1} parent=1 // pred_check
      _
    $region7: #{multi_mlp_forward.1} parent=1 // pred_check_branch
      %17 = sbr.rel (0) target = $region9
    $region8: #{multi_mlp_forward.1} parent=1 // pred_region
      _
    $region9: #{multi_mlp_forward.1} parent=1 // pred_fallthru
      _
    // Predicated region
    $region10: #{multi_mlp_forward.1} parent=1 // pred_check
      _
    $region11: #{multi_mlp_forward.1} parent=1 // pred_check_branch
      %19 = sbr.rel (0) target = $region13
    $region12: #{multi_mlp_forward.1} parent=1 // pred_region
      _
    $region13: #{multi_mlp_forward.1} parent=1 // pred_fallthru
      _
    // Predicated region
    $region14: #{multi_mlp_forward.1} parent=1 // pred_check
      _
    $region15: #{multi_mlp_forward.1} parent=1 // pred_check_branch
      %21 = sbr.rel (0) target = $region17
    $region16: #{multi_mlp_forward.1} parent=1 // pred_region
      _
    $region17: #{multi_mlp_forward.1} parent=1 // pred_fallthru
      _
    // Predicated region
    $region18: #{multi_mlp_forward.1} parent=1 // pred_check
      _
    $region19: #{multi_mlp_forward.1} parent=1 // pred_check_branch
      %23 = sbr.rel (0) target = $region21
    $region20: #{multi_mlp_forward.1} parent=1 // pred_region
      _
    $region21: #{multi_mlp_forward.1} parent=1 // pred_fallthru
      _
    // Predicated region
    $region22: #{multi_mlp_forward.1} parent=1 // pred_check
      _
    $region23: #{multi_mlp_forward.1} parent=1 // pred_check_branch
      %25 = sbr.rel (0) target = $region25
    $region24: #{multi_mlp_forward.1} parent=1 // pred_region
      _
    $region25: #{multi_mlp_forward.1} parent=1 // pred_fallthru
      _
    // Predicated region
    $region26: #{multi_mlp_forward.1} parent=1 // pred_check
      _
    $region27: #{multi_mlp_forward.1} parent=1 // pred_check_branch
      %27 = sbr.rel (0) target = $region29
    $region28: #{multi_mlp_forward.1} parent=1 // pred_region
      _
    $region29: #{multi_mlp_forward.1} parent=1 // pred_fallthru
      _
    // Predicated region
    $region30: #{multi_mlp_forward.1} parent=1 // pred_check
      _
    $region31: #{multi_mlp_forward.1} parent=1 // pred_check_branch
      %29 = sbr.rel (0) target = $region33
    $region32: #{multi_mlp_forward.1} parent=1 // pred_region
      _
    $region33: #{multi_mlp_forward.1} parent=1 // pred_fallthru
      _
    %v30 = vld [vmem:[%s4] sm:$0x3]
    %v31 = vld [vmem:[%s5] sm:$0x3]
    %v32 = vld [vmem:[%s0] sm:$0xff]
    %v33 = vld [vmem:[%s1] sm:$0xff]
    %v34 = vld [vmem:[%s1 + $0x8] sm:$0xff]
    %v35 = vld [vmem:[%s1 + $0x10] sm:$0xff]
    %v36 = vld [vmem:[%s1 + $0x18] sm:$0xff]
    %v37 = vld [vmem:[%s1 + $0x20] sm:$0xff]
    %v38 = vld [vmem:[%s1 + $0x28] sm:$0xff]
    %vm39 = vcmask 392192
    %v41 = vsel %vm39, %v32, 0
    %43 = vmatprep.subr.mxu0 0.0
    %44 = vmatpush1.msra.mxu0 %v33
    %45 = vmatprep.subr.mxu0 0.0
    %46 = vmatpush1.msra.mxu0 %v34
    %47 = vmatprep.subr.mxu0 0.0
    %48 = vmatpush1.msra.mxu0 %v35
    %49 = vmatprep.subr.mxu0 0.0
    %50 = vmatpush1.msra.mxu0 %v36
    %51 = vmatprep.subr.mxu0 0.0
    %52 = vmatpush1.msra.mxu0 %v37
    %53 = vmatprep.subr.mxu0 0.0
    %54 = vmatpush1.msra.mxu0 %v38
    %55 = vmatprep.subr.mxu0 0.0
    %56 = vmatpush1.msra.mxu0 0.0
    %57 = vmatprep.subr.mxu0 0.0
    %58 = vmatpush1.msra.mxu0 0.0
    %59 = vmatprep.subr.mxu0 0.0
    %60 = vmatpush1.msra.mxu0 0.0
    %61 = vmatprep.subr.mxu0 0.0
    %62 = vmatpush1.msra.mxu0 0.0
    %63 = vmatprep.subr.mxu0 0.0
    %64 = vmatpush1.msra.mxu0 0.0
    %65 = vmatprep.subr.mxu0 0.0
    %66 = vmatpush1.msra.mxu0 0.0
    %67 = vmatprep.subr.mxu0 0.0
    %68 = vmatpush1.msra.mxu0 0.0
    %69 = vmatprep.subr.mxu0 0.0
    %70 = vmatpush1.msra.mxu0 0.0
    %71 = vmatprep.subr.mxu0 0.0
    %72 = vmatpush1.msra.mxu0 0.0
    %73 = vmatprep.subr.mxu0 0.0
    %74 = vmatpush1.msra.mxu0 0.0
    %75 = vmatprep.subr.mxu0 0.0
    %76 = vmatpush1.msra.mxu0 0.0
    %77 = vmatprep.subr.mxu0 0.0
    %78 = vmatpush1.msra.mxu0 0.0
    %79 = vmatprep.subr.mxu0 0.0
    %80 = vmatpush1.msra.mxu0 0.0
    %81 = vmatprep.subr.mxu0 0.0
    %82 = vmatpush1.msra.mxu0 0.0
    %83 = vmatprep.subr.mxu0 0.0
    %84 = vmatpush1.msra.mxu0 0.0
    %85 = vmatprep.subr.mxu0 0.0
    %86 = vmatpush1.msra.mxu0 0.0
    %87 = vmatprep.subr.mxu0 0.0
    %88 = vmatpush1.msra.mxu0 0.0
    %89 = vmatprep.subr.mxu0 0.0
    %90 = vmatpush1.msra.mxu0 0.0
    %91 = vmatprep.subr.mxu0 0.0
    %92 = vmatpush1.msra.mxu0 0.0
    %93 = vmatprep.subr.mxu0 0.0
    %94 = vmatpush1.msra.mxu0 0.0
    %95 = vmatprep.subr.mxu0 0.0
    %96 = vmatpush1.msra.mxu0 0.0
    %97 = vmatprep.subr.mxu0 0.0
    %98 = vmatpush1.msra.mxu0 0.0
    %99 = vmatprep.subr.mxu0 0.0
    %100 = vmatpush1.msra.mxu0 0.0
    %101 = vmatprep.subr.mxu0 0.0
    %102 = vmatpush1.msra.mxu0 0.0
    %103 = vmatprep.subr.mxu0 0.0
    %104 = vmatpush1.msra.mxu0 0.0
    %105 = vmatprep.subr.mxu0 0.0
    %106 = vmatpush1.msra.mxu0 0.0
    %107 = vmatprep.mubr.f32.mxu0 0.0
    %108 = vmatmul.mubr.f32.gmra.mrb[0].mxu0 %v41
    %v109 = vpop.f32.mrb[0].mxu0
    %v110 = vadd.f32 0.0, %v109
    %v111 = vpop.f32.mrb[0].mxu0
    %112 = vdwg.mxu0
    %vm113 = vcmask 785408
    %v114 = vsel %vm113, %v110, 0.0
    %v115 = vrot.slane %v114, 4
    %v116 = vadd.f32 %v114, %v115
    %v117 = vrot.slane %v116, 2
    %v118 = vadd.f32 %v116, %v117
    %v119 = vrot.slane %v118, 1
    %v120 = vadd.f32 %v118, %v119
    %v121 = vrcp.pop 8.0
    %v122 = vmul.f32 %v120, %v121
    %v123 = vmul.f32 %v110, %v110
    %v124 = vsel %vm113, %v123, 0.0
    %v125 = vrot.slane %v124, 4
    %v126 = vadd.f32 %v124, %v125
    %v127 = vrot.slane %v126, 2
    %v128 = vadd.f32 %v126, %v127
    %v129 = vrot.slane %v128, 1
    %v130 = vadd.f32 %v128, %v129
    %v131 = vmul.f32 %v130, %v121
    %v132 = vmul.f32 %v122, %v122
    %v133 = vsub.f32 %v131, %v132
    %v134 = vmax.f32 %v133, 0.0
    %v135 = vadd.f32 %v134, 1e-05
    %v136 = vrsqrt.pop %v135
    %v137 = vmul.f32 %v30, %v136
    %v138 = vmul.f32 %v122, %v137
    %v139 = vsub.f32 %v31, %v138
    %v140 = vlaneseq
    %v141 = vshrl.u32 %v140, 7
    %v142 = vsub.s32 0, %v141
    %v143 = vrot.slane %v137, %v142
    %v144 = vmul.f32 %v110, %v143
    %v145 = vlaneseq
    %v146 = vshrl.u32 %v145, 7
    %v147 = vsub.s32 0, %v146
    %v148 = vrot.slane %v139, %v147
    %v149 = vadd.f32 %v144, %v148
    %vm150 = vcmp.ge.f32.partialorder %v149, 0.0
    %v151 = vmul.f32 %v149, 0.05
    %v152 = vsel %vm150, %v149, %v151
    %v153 = vld [vmem:[%s2] sm:$0xff]
    %v154 = vld [vmem:[%s2 + $0x8] sm:$0xff]
    %v155 = vld [vmem:[%s2 + $0x10] sm:$0xff]
    %v156 = vld [vmem:[%s2 + $0x18] sm:$0xff]
    %v157 = vld [vmem:[%s2 + $0x20] sm:$0xff]
    %v158 = vld [vmem:[%s2 + $0x28] sm:$0xff]
    %v159 = vld [vmem:[%s2 + $0x30] sm:$0xff]
    %v160 = vld [vmem:[%s2 + $0x38] sm:$0xff]
    %v161 = vld [vmem:[%s2 + $0x40] sm:$0xff]
    %v162 = vld [vmem:[%s2 + $0x48] sm:$0xff]
    %v163 = vld [vmem:[%s2 + $0x50] sm:$0xff]
    %v164 = vld [vmem:[%s2 + $0x58] sm:$0xff]
    %v166 = vsel %vm113, %v152, 0
    %168 = vmatprep.subr.mxu0 0.0
    %169 = vmatpush1.msra.mxu0 %v153
    %170 = vmatprep.subr.mxu0 0.0
    %171 = vmatpush1.msra.mxu0 %v154
    %172 = vmatprep.subr.mxu0 0.0
    %173 = vmatpush1.msra.mxu0 %v155
    %174 = vmatprep.subr.mxu0 0.0
    %175 = vmatpush1.msra.mxu0 %v156
    %176 = vmatprep.subr.mxu0 0.0
    %177 = vmatpush1.msra.mxu0 %v157
    %178 = vmatprep.subr.mxu0 0.0
    %179 = vmatpush1.msra.mxu0 %v158
    %180 = vmatprep.subr.mxu0 0.0
    %181 = vmatpush1.msra.mxu0 %v159
    %182 = vmatprep.subr.mxu0 0.0
    %183 = vmatpush1.msra.mxu0 %v160
    %184 = vmatprep.subr.mxu0 0.0
    %185 = vmatpush1.msra.mxu0 %v161
    %186 = vmatprep.subr.mxu0 0.0
    %187 = vmatpush1.msra.mxu0 %v162
    %188 = vmatprep.subr.mxu0 0.0
    %189 = vmatpush1.msra.mxu0 %v163
    %190 = vmatprep.subr.mxu0 0.0
    %191 = vmatpush1.msra.mxu0 %v164
    %192 = vmatprep.subr.mxu0 0.0
    %193 = vmatpush1.msra.mxu0 0.0
    %194 = vmatprep.subr.mxu0 0.0
    %195 = vmatpush1.msra.mxu0 0.0
    %196 = vmatprep.subr.mxu0 0.0
    %197 = vmatpush1.msra.mxu0 0.0
    %198 = vmatprep.subr.mxu0 0.0
    %199 = vmatpush1.msra.mxu0 0.0
    %200 = vmatprep.subr.mxu0 0.0
    %201 = vmatpush1.msra.mxu0 0.0
    %202 = vmatprep.subr.mxu0 0.0
    %203 = vmatpush1.msra.mxu0 0.0
    %204 = vmatprep.subr.mxu0 0.0
    %205 = vmatpush1.msra.mxu0 0.0
    %206 = vmatprep.subr.mxu0 0.0
    %207 = vmatpush1.msra.mxu0 0.0
    %208 = vmatprep.subr.mxu0 0.0
    %209 = vmatpush1.msra.mxu0 0.0
    %210 = vmatprep.subr.mxu0 0.0
    %211 = vmatpush1.msra.mxu0 0.0
    %212 = vmatprep.subr.mxu0 0.0
    %213 = vmatpush1.msra.mxu0 0.0
    %214 = vmatprep.subr.mxu0 0.0
    %215 = vmatpush1.msra.mxu0 0.0
    %216 = vmatprep.subr.mxu0 0.0
    %217 = vmatpush1.msra.mxu0 0.0
    %218 = vmatprep.subr.mxu0 0.0
    %219 = vmatpush1.msra.mxu0 0.0
    %220 = vmatprep.subr.mxu0 0.0
    %221 = vmatpush1.msra.mxu0 0.0
    %222 = vmatprep.subr.mxu0 0.0
    %223 = vmatpush1.msra.mxu0 0.0
    %224 = vmatprep.subr.mxu0 0.0
    %225 = vmatpush1.msra.mxu0 0.0
    %226 = vmatprep.subr.mxu0 0.0
    %227 = vmatpush1.msra.mxu0 0.0
    %228 = vmatprep.subr.mxu0 0.0
    %229 = vmatpush1.msra.mxu0 0.0
    %230 = vmatprep.subr.mxu0 0.0
    %231 = vmatpush1.msra.mxu0 0.0
    %232 = vmatprep.mubr.f32.mxu0 0.0
    %233 = vmatmul.mubr.f32.gmra.mrb[0].mxu0 %v166
    %v234 = vpop.f32.mrb[0].mxu0
    %v235 = vadd.f32 0.0, %v234
    %v236 = vpop.f32.mrb[0].mxu0
    %237 = vdwg.mxu0
    %v238 = vsel %vm113, %v235, 0.0
    %v239 = vrot.slane %v238, 4
    %v240 = vadd.f32 %v238, %v239
    %v241 = vrot.slane %v240, 2
    %v242 = vadd.f32 %v240, %v241
    %v243 = vrot.slane %v242, 1
    %v244 = vadd.f32 %v242, %v243
    %v245 = vmul.f32 %v244, %v121
    %v246 = vmul.f32 %v235, %v235
    %v247 = vsel %vm113, %v246, 0.0
    %v248 = vrot.slane %v247, 4
    %v249 = vadd.f32 %v247, %v248
    %v250 = vrot.slane %v249, 2
    %v251 = vadd.f32 %v249, %v250
    %v252 = vrot.slane %v251, 1
    %v253 = vadd.f32 %v251, %v252
    %v254 = vmul.f32 %v253, %v121
    %v255 = vmul.f32 %v245, %v245
    %v256 = vsub.f32 %v254, %v255
    %v257 = vmax.f32 %v256, 0.0
    %v258 = vadd.f32 %v257, 1e-05
    %v259 = vrsqrt.pop %v258
    %v260 = vmul.f32 %v30, %v259
    %v261 = vmul.f32 %v245, %v260
    %v262 = vsub.f32 %v31, %v261
    %v263 = vlaneseq
    %v264 = vshrl.u32 %v263, 7
    %v265 = vsub.s32 1, %v264
    %v266 = vrot.slane %v260, %v265
    %v267 = vmul.f32 %v235, %v266
    %v268 = vlaneseq
    %v269 = vshrl.u32 %v268, 7
    %v270 = vsub.s32 1, %v269
    %v271 = vrot.slane %v262, %v270
    %v272 = vadd.f32 %v267, %v271
    %vm273 = vcmp.ge.f32.partialorder %v272, 0.0
    %v274 = vmul.f32 %v272, 0.05
    %v275 = vsel %vm273, %v272, %v274
    %v276 = vld [vmem:[%s3] sm:$0xff]
    %v277 = vld [vmem:[%s3 + $0x8] sm:$0xff]
    %v278 = vld [vmem:[%s3 + $0x10] sm:$0xff]
    %v279 = vld [vmem:[%s3 + $0x18] sm:$0xff]
    %v280 = vld [vmem:[%s3 + $0x20] sm:$0xff]
    %v281 = vld [vmem:[%s3 + $0x28] sm:$0xff]
    %v282 = vld [vmem:[%s3 + $0x30] sm:$0xff]
    %v283 = vld [vmem:[%s3 + $0x38] sm:$0xff]
    %v284 = vld [vmem:[%s3 + $0x40] sm:$0xff]
    %v285 = vld [vmem:[%s3 + $0x48] sm:$0xff]
    %v286 = vld [vmem:[%s3 + $0x50] sm:$0xff]
    %v287 = vld [vmem:[%s3 + $0x58] sm:$0xff]
    %v289 = vsel %vm113, %v275, 0
    %291 = vmatprep.subr.mxu0 0.0
    %292 = vmatpush1.msra.mxu0 %v276
    %293 = vmatprep.subr.mxu0 0.0
    %294 = vmatpush1.msra.mxu0 %v277
    %295 = vmatprep.subr.mxu0 0.0
    %296 = vmatpush1.msra.mxu0 %v278
    %297 = vmatprep.subr.mxu0 0.0
    %298 = vmatpush1.msra.mxu0 %v279
    %299 = vmatprep.subr.mxu0 0.0
    %300 = vmatpush1.msra.mxu0 %v280
    %301 = vmatprep.subr.mxu0 0.0
    %302 = vmatpush1.msra.mxu0 %v281
    %303 = vmatprep.subr.mxu0 0.0
    %304 = vmatpush1.msra.mxu0 %v282
    %305 = vmatprep.subr.mxu0 0.0
    %306 = vmatpush1.msra.mxu0 %v283
    %307 = vmatprep.subr.mxu0 0.0
    %308 = vmatpush1.msra.mxu0 %v284
    %309 = vmatprep.subr.mxu0 0.0
    %310 = vmatpush1.msra.mxu0 %v285
    %311 = vmatprep.subr.mxu0 0.0
    %312 = vmatpush1.msra.mxu0 %v286
    %313 = vmatprep.subr.mxu0 0.0
    %314 = vmatpush1.msra.mxu0 %v287
    %315 = vmatprep.subr.mxu0 0.0
    %316 = vmatpush1.msra.mxu0 0.0
    %317 = vmatprep.subr.mxu0 0.0
    %318 = vmatpush1.msra.mxu0 0.0
    %319 = vmatprep.subr.mxu0 0.0
    %320 = vmatpush1.msra.mxu0 0.0
    %321 = vmatprep.subr.mxu0 0.0
    %322 = vmatpush1.msra.mxu0 0.0
    %323 = vmatprep.subr.mxu0 0.0
    %324 = vmatpush1.msra.mxu0 0.0
    %325 = vmatprep.subr.mxu0 0.0
    %326 = vmatpush1.msra.mxu0 0.0
    %327 = vmatprep.subr.mxu0 0.0
    %328 = vmatpush1.msra.mxu0 0.0
    %329 = vmatprep.subr.mxu0 0.0
    %330 = vmatpush1.msra.mxu0 0.0
    %331 = vmatprep.subr.mxu0 0.0
    %332 = vmatpush1.msra.mxu0 0.0
    %333 = vmatprep.subr.mxu0 0.0
    %334 = vmatpush1.msra.mxu0 0.0
    %335 = vmatprep.subr.mxu0 0.0
    %336 = vmatpush1.msra.mxu0 0.0
    %337 = vmatprep.subr.mxu0 0.0
    %338 = vmatpush1.msra.mxu0 0.0
    %339 = vmatprep.subr.mxu0 0.0
    %340 = vmatpush1.msra.mxu0 0.0
    %341 = vmatprep.subr.mxu0 0.0
    %342 = vmatpush1.msra.mxu0 0.0
    %343 = vmatprep.subr.mxu0 0.0
    %344 = vmatpush1.msra.mxu0 0.0
    %345 = vmatprep.subr.mxu0 0.0
    %346 = vmatpush1.msra.mxu0 0.0
    %347 = vmatprep.subr.mxu0 0.0
    %348 = vmatpush1.msra.mxu0 0.0
    %349 = vmatprep.subr.mxu0 0.0
    %350 = vmatpush1.msra.mxu0 0.0
    %351 = vmatprep.subr.mxu0 0.0
    %352 = vmatpush1.msra.mxu0 0.0
    %353 = vmatprep.subr.mxu0 0.0
    %354 = vmatpush1.msra.mxu0 0.0
    %355 = vmatprep.mubr.f32.mxu0 0.0
    %356 = vmatmul.mubr.f32.gmra.mrb[0].mxu0 %v289
    %v357 = vpop.f32.mrb[0].mxu0
    %v358 = vadd.f32 0.0, %v357
    %v359 = vpop.f32.mrb[0].mxu0
    %360 = vdwg.mxu0
    %v361 = vld [vmem:[%s6] sm:$0x1]
    %v362 = vld [vmem:[%s7] sm:$0x1]
    %vm363 = vcmask 195584
    %v364 = vsel %vm363, %v358, 0.0
    %v365 = vrot.slane %v364, 4
    %v366 = vadd.f32 %v364, %v365
    %v367 = vrot.slane %v366, 2
    %v368 = vadd.f32 %v366, %v367
    %v369 = vrot.slane %v368, 1
    %v370 = vadd.f32 %v368, %v369
    %v371 = vmul.f32 %v370, %v121
    %v372 = vmul.f32 %v358, %v358
    %v373 = vsel %vm363, %v372, 0.0
    %v374 = vrot.slane %v373, 4
    %v375 = vadd.f32 %v373, %v374
    %v376 = vrot.slane %v375, 2
    %v377 = vadd.f32 %v375, %v376
    %v378 = vrot.slane %v377, 1
    %v379 = vadd.f32 %v377, %v378
    %v380 = vmul.f32 %v379, %v121
    %v381 = vmul.f32 %v371, %v371
    %v382 = vsub.f32 %v380, %v381
    %v383 = vmax.f32 %v382, 0.0
    %v384 = vadd.f32 %v383, 1e-05
    %v385 = vrsqrt.pop %v384
    %v386 = vmul.f32 %v361, %v385
    %v387 = vmul.f32 %v371, %v386
    %v388 = vsub.f32 %v362, %v387
    %v390 = vlaneseq
    %v391 = vshrl.u32 %v390, 7
    %v392 = vsub.s32 0, %v391
    %v393 = vrot.slane %v386, %v392
    %v395 = vmul.f32 %v358, %v393
    %v397 = vlaneseq
    %v398 = vshrl.u32 %v397, 7
    %v399 = vsub.s32 0, %v398
    %v400 = vrot.slane %v388, %v399
    %v402 = vadd.f32 %v395, %v400
    %403 = vst.msk [vmem:[#allocation2] sm:$0xff] %vm363, %v402
    // Predicated region
    $region34: #{multi_mlp_forward.1} parent=1 // pred_check
      _
    $region35: #{multi_mlp_forward.1} parent=1 // pred_check_branch
      %405 = sbr.rel (0) target = $region37
    $region36: #{multi_mlp_forward.1} parent=1 // pred_region
      %s407 = ssub.s32 128, 128
      %408 = vsyncadd [#allocation3], %s407
      %s410 = sshll.u32 [#allocation2], 4
      %s411 = int_to_ptr.vmem [resolvable:$true] %s410
      %413 = dma.vmem_to_hbm [thread:$0]  %s411, 128, %s8, [#allocation3]
    $region37: #{multi_mlp_forward.1} parent=1 // pred_fallthru
      _
    // Predicated region
    $region38: #{multi_mlp_forward.1} parent=1 // pred_check
      _
    $region39: #{multi_mlp_forward.1} parent=1 // pred_check_branch
      %415 = sbr.rel (0) target = $region41
    $region40: #{multi_mlp_forward.1} parent=1 // pred_region
      %416 = dma.done [#allocation3], 128
    $region41: #{multi_mlp_forward.1} parent=1 // pred_fallthru
      _
    %417 = vsyncpa [#allocation3], 1

</llo_original>
